<compile_context>
chip_gen: v7x
topology: tpu7x:2x2x1
jax: 0.10.0
libtpu: 0.0.40
codegen_flags: <defaults>
</compile_context>

<pallas_src>
import numpy as np
import jax
import jax.numpy as jnp
from jax.experimental import pallas as pl
from jax.experimental.pallas import tpu as pltpu

H1 = 64        # first hidden width (from the PyTorch module)
H2 = 200       # logical second hidden width (from the PyTorch module)
H2_PAD = 256   # padded to a multiple of 128 (zero-padded, numerically a no-op)
LANE = 128
SUBLANE = 8
BIG_TILE = 512  # batch-tile target when batch is large (amortizes ~0.35us/step)


def _round_up(n, m):
    return (n + m - 1) // m * m


def mlp_kernel(x_ref, w1_ref, b1_ref, w2_ref, b2_ref, w3_ref, b3_ref, o_ref):
    # Layer 1: (TB, in) @ (in, 64) -- bf16 operands, f32 accumulation on the MXU.
    h1 = jnp.dot(x_ref[...], w1_ref[...], preferred_element_type=jnp.float32)
    h1 = jnp.maximum(h1 + b1_ref[...], 0.0)          # bias + ReLU in f32 (VPU)
    # Layer 2: (TB, 64) @ (64, 256)
    h2 = jnp.dot(h1.astype(jnp.bfloat16), w2_ref[...],
                 preferred_element_type=jnp.float32)
    h2 = jnp.maximum(h2 + b2_ref[...], 0.0)
    # Layer 3: (TB, 256) @ (256, out_pad), no activation.
    out = jnp.dot(h2.astype(jnp.bfloat16), w3_ref[...],
                  preferred_element_type=jnp.float32)
    o_ref[...] = (out + b3_ref[...]).astype(o_ref.dtype)


def network_forward(x, params):
    """x: (batch, *) -- trailing dims are flattened to in_features (as nn.Linear)."""
    batch = x.shape[0]
    x = x.reshape(batch, -1).astype(jnp.bfloat16)
    in_features = x.shape[1]
    out_dim = params["out_dim"]
    out_pad = params["w3"].shape[1]

    # Batch tile: go big (>= 512 rows) when the batch allows; otherwise just round
    # the whole batch up to the sublane quantum so the single block is legal.
    tb = BIG_TILE if batch >= BIG_TILE else _round_up(batch, SUBLANE)
    padded_batch = _round_up(batch, tb)
    if padded_batch != batch:
        x = jnp.pad(x, ((0, padded_batch - batch), (0, 0)))

    grid = (padded_batch // tb,)
    resident = lambda i: (0, 0)   # weights/biases: same block every step -> VMEM-resident

    out_padded = pl.pallas_call(
        mlp_kernel,
        out_shape=jax.ShapeDtypeStruct((padded_batch, out_pad), jnp.float32),
        grid=grid,
        in_specs=[
            pl.BlockSpec((tb, in_features), lambda i: (i, 0)),     # x: tiled over batch
            pl.BlockSpec(params["w1"].shape, resident),
            pl.BlockSpec(params["b1"].shape, resident),
            pl.BlockSpec(params["w2"].shape, resident),
            pl.BlockSpec(params["b2"].shape, resident),
            pl.BlockSpec(params["w3"].shape, resident),
            pl.BlockSpec(params["b3"].shape, resident),
        ],
        out_specs=pl.BlockSpec((tb, out_pad), lambda i: (i, 0)),
        compiler_params=pltpu.CompilerParams(
            dimension_semantics=("parallel",)),   # v7x: shard batch across 2 TCs
    )(x, params["w1"], params["b1"], params["w2"], params["b2"],
      params["w3"], params["b3"])

    return out_padded[:batch, :out_dim]


def init_params(key, in_features, output_dim):
    """PyTorch-Linear-style U(-1/sqrt(fan_in), 1/sqrt(fan_in)) init.

    Kernel params are stored transposed as (in, out); matmul operands in bf16,
    zero-padded to lane-dense widths (H2->256, output_dim->ceil128). Biases stay
    f32. Unpadded f32 copies are kept under params["ref"] for the reference."""
    def layer(k, fan_in, fan_out):
        kw, kb = jax.random.split(k)
        bound = 1.0 / np.sqrt(fan_in)
        w = jax.random.uniform(kw, (fan_in, fan_out), jnp.float32, -bound, bound)
        b = jax.random.uniform(kb, (1, fan_out), jnp.float32, -bound, bound)
        return w, b

    k1, k2, k3 = jax.random.split(key, 3)
    w1, b1 = layer(k1, in_features, H1)
    w2, b2 = layer(k2, H1, H2)
    w3, b3 = layer(k3, H2, output_dim)

    out_pad = _round_up(output_dim, LANE)
    params = {
        "w1": w1.astype(jnp.bfloat16),
        "b1": b1,
        "w2": jnp.pad(w2, ((0, 0), (0, H2_PAD - H2))).astype(jnp.bfloat16),
        "b2": jnp.pad(b2, ((0, 0), (0, H2_PAD - H2))),
        "w3": jnp.pad(w3, ((0, H2_PAD - H2), (0, out_pad - output_dim))
                      ).astype(jnp.bfloat16),
        "b3": jnp.pad(b3, ((0, 0), (0, out_pad - output_dim))),
        "out_dim": output_dim,
        "ref": {"w1": w1, "b1": b1, "w2": w2, "b2": b2, "w3": w3, "b3": b3},
    }
    return params


def network_ref(x, params):
    """Pure-JAX f32 reference for correctness checking."""
    r = params["ref"]
    x = x.reshape(x.shape[0], -1)
    h = jnp.maximum(x @ r["w1"] + r["b1"], 0.0)
    h = jnp.maximum(h @ r["w2"] + r["b2"], 0.0)
    return h @ r["w3"] + r["b3"]


if __name__ == "__main__":
    key = jax.random.PRNGKey(0)
    k_params, k_x = jax.random.split(key)

    input_shape = (4, 16)             # -> in_features = 64
    in_features = int(np.prod(input_shape))
    output_dim = 8
    batch = 8

    params = init_params(k_params, in_features, output_dim)
    x = jax.random.normal(k_x, (batch, in_features), jnp.float32)

    out = network_forward(x, params)
    out = jax.block_until_ready(out)
    assert out.shape == (batch, output_dim)

    ref = network_ref(x, params)
    # bf16 matmul operands (f32 accumulation) -> loosened tolerance vs f32 ref.
    np.testing.assert_allclose(np.asarray(out), np.asarray(ref),
                               rtol=5e-2, atol=5e-2)

    print("KERNEL_OK")
</pallas_src>

<mosaic_0001>
module attributes {stable_mosaic.version = 11 : i64} {
  func.func @mlp_kernel(%arg0: i32, %arg1: memref<8x64xbf16, #tpu.memory_space<vmem>>, %arg2: memref<64x64xbf16, #tpu.memory_space<vmem>>, %arg3: memref<1x64xf32, #tpu.memory_space<vmem>>, %arg4: memref<64x256xbf16, #tpu.memory_space<vmem>>, %arg5: memref<1x256xf32, #tpu.memory_space<vmem>>, %arg6: memref<256x128xbf16, #tpu.memory_space<vmem>>, %arg7: memref<1x128xf32, #tpu.memory_space<vmem>>, %arg8: memref<8x128xf32, #tpu.memory_space<vmem>>) attributes {dimension_semantics = [#tpu.dimension_semantics<parallel>], iteration_bounds = array<i64: 1>, scalar_prefetch = 0 : i64, scratch_operands = 0 : i64, tpu.core_type = #tpu.core_type<tc>, window_params = [{transform_indices = @transform_0, window_bounds = array<i64: 8, 64>}, {pipeline_mode = #tpu.pipeline_mode<synchronous>, transform_indices = @transform_1, window_bounds = array<i64: 64, 64>}, {pipeline_mode = #tpu.pipeline_mode<synchronous>, transform_indices = @transform_2, window_bounds = array<i64: 1, 64>}, {pipeline_mode = #tpu.pipeline_mode<synchronous>, transform_indices = @transform_3, window_bounds = array<i64: 64, 256>}, {pipeline_mode = #tpu.pipeline_mode<synchronous>, transform_indices = @transform_4, window_bounds = array<i64: 1, 256>}, {pipeline_mode = #tpu.pipeline_mode<synchronous>, transform_indices = @transform_5, window_bounds = array<i64: 256, 128>}, {pipeline_mode = #tpu.pipeline_mode<synchronous>, transform_indices = @transform_6, window_bounds = array<i64: 1, 128>}, {transform_indices = @transform_7, window_bounds = array<i64: 8, 128>}]} {
    %c0 = arith.constant 0 : index
    %c0_0 = arith.constant 0 : index
    %0 = vector.load %arg1[%c0, %c0_0] : memref<8x64xbf16, #tpu.memory_space<vmem>>, vector<8x64xbf16>
    %c0_1 = arith.constant 0 : index
    %c0_2 = arith.constant 0 : index
    %1 = vector.load %arg2[%c0_1, %c0_2] : memref<64x64xbf16, #tpu.memory_space<vmem>>, vector<64x64xbf16>
    %cst = arith.constant dense<0.000000e+00> : vector<8x64xf32>
    %2 = tpu.matmul %0, %1, %cst {dimension_numbers = #tpu.dot_dimension_numbers<[1], [0], [0], [1], [0, 0, 1, 1], [], []>} : vector<8x64xbf16>, vector<64x64xbf16>, vector<8x64xf32> -> vector<8x64xf32>
    %c0_3 = arith.constant 0 : index
    %c0_4 = arith.constant 0 : index
    %3 = vector.load %arg3[%c0_3, %c0_4] : memref<1x64xf32, #tpu.memory_space<vmem>>, vector<1x64xf32>
    %4 = vector.broadcast %3 : vector<1x64xf32> to vector<8x64xf32>
    %5 = arith.addf %2, %4 : vector<8x64xf32>
    %cst_5 = arith.constant 0.000000e+00 : f32
    %6 = vector.broadcast %cst_5 : f32 to vector<8x64xf32>
    %7 = arith.maximumf %5, %6 : vector<8x64xf32>
    %8 = arith.truncf %7 : vector<8x64xf32> to vector<8x64xbf16>
    %c0_6 = arith.constant 0 : index
    %c0_7 = arith.constant 0 : index
    %9 = vector.load %arg4[%c0_6, %c0_7] : memref<64x256xbf16, #tpu.memory_space<vmem>>, vector<64x256xbf16>
    %cst_8 = arith.constant dense<0.000000e+00> : vector<8x256xf32>
    %10 = tpu.matmul %8, %9, %cst_8 {dimension_numbers = #tpu.dot_dimension_numbers<[1], [0], [0], [1], [0, 0, 1, 1], [], []>} : vector<8x64xbf16>, vector<64x256xbf16>, vector<8x256xf32> -> vector<8x256xf32>
    %c0_9 = arith.constant 0 : index
    %c0_10 = arith.constant 0 : index
    %11 = vector.load %arg5[%c0_9, %c0_10] : memref<1x256xf32, #tpu.memory_space<vmem>>, vector<1x256xf32>
    %12 = vector.broadcast %11 : vector<1x256xf32> to vector<8x256xf32>
    %13 = arith.addf %10, %12 : vector<8x256xf32>
    %cst_11 = arith.constant 0.000000e+00 : f32
    %14 = vector.broadcast %cst_11 : f32 to vector<8x256xf32>
    %15 = arith.maximumf %13, %14 : vector<8x256xf32>
    %16 = arith.truncf %15 : vector<8x256xf32> to vector<8x256xbf16>
    %c0_12 = arith.constant 0 : index
    %c0_13 = arith.constant 0 : index
    %17 = vector.load %arg6[%c0_12, %c0_13] : memref<256x128xbf16, #tpu.memory_space<vmem>>, vector<256x128xbf16>
    %cst_14 = arith.constant dense<0.000000e+00> : vector<8x128xf32>
    %18 = tpu.matmul %16, %17, %cst_14 {dimension_numbers = #tpu.dot_dimension_numbers<[1], [0], [0], [1], [0, 0, 1, 1], [], []>} : vector<8x256xbf16>, vector<256x128xbf16>, vector<8x128xf32> -> vector<8x128xf32>
    %c0_15 = arith.constant 0 : index
    %c0_16 = arith.constant 0 : index
    %19 = vector.load %arg7[%c0_15, %c0_16] : memref<1x128xf32, #tpu.memory_space<vmem>>, vector<1x128xf32>
    %20 = vector.broadcast %19 : vector<1x128xf32> to vector<8x128xf32>
    %21 = arith.addf %18, %20 : vector<8x128xf32>
    %c0_17 = arith.constant 0 : index
    %c0_18 = arith.constant 0 : index
    %22 = vector.load %arg8[%c0_17, %c0_18] : memref<8x128xf32, #tpu.memory_space<vmem>>, vector<8x128xf32>
    tpu.vector_store %arg8[%c0_17, %c0_18], %21 {strides = array<i32>} : memref<8x128xf32, #tpu.memory_space<vmem>>, vector<8x128xf32>,
    return
  }
  func.func @transform_0(%arg0: i32) -> (i32, i32) {
    %c0_i32 = arith.constant 0 : i32
    %c0_i32_0 = arith.constant 0 : i32
    return %arg0, %c0_i32 : i32, i32
  }
  func.func @transform_1(%arg0: i32) -> (i32, i32) {
    %c0_i32 = arith.constant 0 : i32
    %c0_i32_0 = arith.constant 0 : i32
    %c0_i32_1 = arith.constant 0 : i32
    return %c0_i32, %c0_i32_0 : i32, i32
  }
  func.func @transform_2(%arg0: i32) -> (i32, i32) {
    %c0_i32 = arith.constant 0 : i32
    %c0_i32_0 = arith.constant 0 : i32
    %c0_i32_1 = arith.constant 0 : i32
    return %c0_i32, %c0_i32_0 : i32, i32
  }
  func.func @transform_3(%arg0: i32) -> (i32, i32) {
    %c0_i32 = arith.constant 0 : i32
    %c0_i32_0 = arith.constant 0 : i32
    %c0_i32_1 = arith.constant 0 : i32
    return %c0_i32, %c0_i32_0 : i32, i32
  }
  func.func @transform_4(%arg0: i32) -> (i32, i32) {
    %c0_i32 = arith.constant 0 : i32
    %c0_i32_0 = arith.constant 0 : i32
    %c0_i32_1 = arith.constant 0 : i32
    return %c0_i32, %c0_i32_0 : i32, i32
  }
  func.func @transform_5(%arg0: i32) -> (i32, i32) {
    %c0_i32 = arith.constant 0 : i32
    %c0_i32_0 = arith.constant 0 : i32
    %c0_i32_1 = arith.constant 0 : i32
    return %c0_i32, %c0_i32_0 : i32, i32
  }
  func.func @transform_6(%arg0: i32) -> (i32, i32) {
    %c0_i32 = arith.constant 0 : i32
    %c0_i32_0 = arith.constant 0 : i32
    %c0_i32_1 = arith.constant 0 : i32
    return %c0_i32, %c0_i32_0 : i32, i32
  }
  func.func @transform_7(%arg0: i32) -> (i32, i32) {
    %c0_i32 = arith.constant 0 : i32
    %c0_i32_0 = arith.constant 0 : i32
    return %arg0, %c0_i32 : i32, i32
  }
}

</mosaic_0001>

<llo_original>
// kernel: tpu_custom_call.1
$region0: #{tpu_custom_call.1}
  #allocation0 [shape = 'u32[]', space=smem, size = 0x4, offset = 0x4, fixed_abs, tag = 'smem constant byte address 0x4 - core index']
  #allocation1 [shape = 'u32[144,128]{1,0:T(1,128)}', space=vmem, size = 0x12000, scoped, tag = 'internal scratch']
  %s0 = inlined_call_operand.hbm [shape: bf16[8,64], index: 0, kind: input, shape index: {}]
  %s1 = inlined_call_operand.hbm [shape: bf16[64,64], index: 1, kind: input, shape index: {}]
  %s2 = inlined_call_operand.vmem [shape: f32[1,64], index: 2, kind: input, shape index: {}]
  %s3 = inlined_call_operand.hbm [shape: bf16[64,256], index: 3, kind: input, shape index: {}]
  %s4 = inlined_call_operand.vmem [shape: f32[1,256], index: 4, kind: input, shape index: {}]
  %s5 = inlined_call_operand.hbm [shape: bf16[256,128], index: 5, kind: input, shape index: {}]
  %s6 = inlined_call_operand.vmem [shape: f32[1,128], index: 6, kind: input, shape index: {}]
  %s7 = inlined_call_operand.hbm [shape: f32[8,128], index: 7, kind: output, shape index: {}]
  %s8 = sld [smem:[#allocation0]]
  $region54: #{tpu_custom_call.1} parent=0
    _
  %s10 = ssub.s32 1, %s8
  %s11 = scalar_select 0, %s10, %s8
  $region1: #{tpu_custom_call.1} parent=0
    #allocation2 [shape = 'u8[2048]{0}', space=vmem, size = 0x800, scoped, tag = 'input window, operand 0, single buffered']
    #allocation3 [shape = 's32[1]{0}', space=sflag, size = 0x4, scoped, tag = 'scoped memory for tpu_custom_call.1']
    #allocation4 [shape = 's32[1]{0}', space=sflag, size = 0x4, scoped, tag = 'scoped memory for tpu_custom_call.1']
    #allocation5 [shape = 'u8[16384]{0}', space=vmem, size = 0x4000, scoped, tag = 'input window, operand 1, single buffered']
    #allocation6 [shape = 's32[1]{0}', space=sflag, size = 0x4, scoped, tag = 'scoped memory for tpu_custom_call.1']
    #allocation7 [shape = 'u8[32768]{0}', space=vmem, size = 0x8000, scoped, tag = 'input window, operand 3, single buffered']
    #allocation8 [shape = 'u8[65536]{0}', space=vmem, size = 0x10000, scoped, tag = 'input window, operand 5, single buffered']
    #allocation9 [shape = 's32[1]{0}', space=sflag, size = 0x4, scoped, tag = 'scoped memory for tpu_custom_call.1']
    #allocation10 [shape = 'u8[4096]{0}', space=vmem, size = 0x1000, scoped, tag = 'output window, operand 0, single buffered']
    %12 = vsyncpa [#allocation3], 0
    %13 = vsyncpa [#allocation6], 0
    %14 = vsyncpa [#allocation9], 0
    %15 = vsyncpa [#allocation4], 0
    // Predicated region
    $region2: #{tpu_custom_call.1} parent=1 // pred_check
      _
    $region3: #{tpu_custom_call.1} parent=1 // pred_check_branch
      %17 = sbr.rel (0) target = $region5
    $region4: #{tpu_custom_call.1} parent=1 // pred_region
      %s19 = ssub.s32 64, 64
      %20 = vsyncadd [#allocation3], %s19
      %s22 = sshll.u32 [#allocation2], 4
      %s23 = int_to_ptr.vmem [resolvable:$true] %s22
      %25 = dma.hbm_to_vmem [thread:$0]  %s0, 64, %s23, [#allocation3]
    $region5: #{tpu_custom_call.1} parent=1 // pred_fallthru
      _
    // Predicated region
    $region6: #{tpu_custom_call.1} parent=1 // pred_check
      _
    $region7: #{tpu_custom_call.1} parent=1 // pred_check_branch
      %27 = sbr.rel (0) target = $region9
    $region8: #{tpu_custom_call.1} parent=1 // pred_region
      %s29 = ssub.s32 512, 512
      %30 = vsyncadd [#allocation6], %s29
      %s31 = sshll.u32 [#allocation5], 4
      %s32 = int_to_ptr.vmem [resolvable:$true] %s31
      %37 = dma.hbm_to_vmem [thread:$0]  %s1, 512, %s32, [#allocation6], 64, 64, 4
    $region9: #{tpu_custom_call.1} parent=1 // pred_fallthru
      _
    // Predicated region
    $region10: #{tpu_custom_call.1} parent=1 // pred_check
      _
    $region11: #{tpu_custom_call.1} parent=1 // pred_check_branch
      %39 = sbr.rel (0) target = $region13
    $region12: #{tpu_custom_call.1} parent=1 // pred_region
      _
    $region13: #{tpu_custom_call.1} parent=1 // pred_fallthru
      _
    // Predicated region
    $region14: #{tpu_custom_call.1} parent=1 // pred_check
      _
    $region15: #{tpu_custom_call.1} parent=1 // pred_check_branch
      %41 = sbr.rel (0) target = $region17
    $region16: #{tpu_custom_call.1} parent=1 // pred_region
      %s43 = ssub.s32 1024, 1024
      %44 = vsyncadd [#allocation6], %s43
      %s45 = sshll.u32 [#allocation7], 4
      %s46 = int_to_ptr.vmem [resolvable:$true] %s45
      %51 = dma.hbm_to_vmem [thread:$0]  %s3, 1024, %s46, [#allocation6], 128, 128, 8
    $region17: #{tpu_custom_call.1} parent=1 // pred_fallthru
      _
    // Predicated region
    $region18: #{tpu_custom_call.1} parent=1 // pred_check
      _
    $region19: #{tpu_custom_call.1} parent=1 // pred_check_branch
      %53 = sbr.rel (0) target = $region21
    $region20: #{tpu_custom_call.1} parent=1 // pred_region
      _
    $region21: #{tpu_custom_call.1} parent=1 // pred_fallthru
      _
    // Predicated region
    $region22: #{tpu_custom_call.1} parent=1 // pred_check
      _
    $region23: #{tpu_custom_call.1} parent=1 // pred_check_branch
      %55 = sbr.rel (0) target = $region25
    $region24: #{tpu_custom_call.1} parent=1 // pred_region
      %s57 = ssub.s32 2048, 2048
      %58 = vsyncadd [#allocation9], %s57
      %s59 = sshll.u32 [#allocation8], 4
      %s60 = int_to_ptr.vmem [resolvable:$true] %s59
      %65 = dma.hbm_to_vmem [thread:$0]  %s5, 2048, %s60, [#allocation9], 64, 64, 4
    $region25: #{tpu_custom_call.1} parent=1 // pred_fallthru
      _
    // Predicated region
    $region26: #{tpu_custom_call.1} parent=1 // pred_check
      _
    $region27: #{tpu_custom_call.1} parent=1 // pred_check_branch
      %67 = sbr.rel (0) target = $region29
    $region28: #{tpu_custom_call.1} parent=1 // pred_region
      _
    $region29: #{tpu_custom_call.1} parent=1 // pred_fallthru
      _
    // Predicated region
    $region30: #{tpu_custom_call.1} parent=1 // pred_check
      _
    $region31: #{tpu_custom_call.1} parent=1 // pred_check_branch
      %69 = sbr.rel (0) target = $region33
    $region32: #{tpu_custom_call.1} parent=1 // pred_region
      %70 = dma.done [#allocation3], 64
    $region33: #{tpu_custom_call.1} parent=1 // pred_fallthru
      _
    // Predicated region
    $region34: #{tpu_custom_call.1} parent=1 // pred_check
      _
    $region35: #{tpu_custom_call.1} parent=1 // pred_check_branch
      %72 = sbr.rel (0) target = $region37
    $region36: #{tpu_custom_call.1} parent=1 // pred_region
      %73 = dma.done [#allocation6], 512
    $region37: #{tpu_custom_call.1} parent=1 // pred_fallthru
      _
    // Predicated region
    $region38: #{tpu_custom_call.1} parent=1 // pred_check
      _
    $region39: #{tpu_custom_call.1} parent=1 // pred_check_branch
      %75 = sbr.rel (0) target = $region41
    $region40: #{tpu_custom_call.1} parent=1 // pred_region
      %76 = dma.done [#allocation6], 1024
    $region41: #{tpu_custom_call.1} parent=1 // pred_fallthru
      _
    // Predicated region
    $region42: #{tpu_custom_call.1} parent=1 // pred_check
      _
    $region43: #{tpu_custom_call.1} parent=1 // pred_check_branch
      %78 = sbr.rel (0) target = $region45
    $region44: #{tpu_custom_call.1} parent=1 // pred_region
      %79 = dma.done [#allocation9], 2048
    $region45: #{tpu_custom_call.1} parent=1 // pred_fallthru
      _
    %v81 = vld [vmem:[#allocation2] sm:$0xf]
    %v82 = vld [vmem:[#allocation5] sm:$0xf]
    %v83 = vld [vmem:[#allocation5 + $0x4] sm:$0xf]
    %v84 = vld [vmem:[#allocation5 + $0x8] sm:$0xf]
    %v85 = vld [vmem:[#allocation5 + $0xc] sm:$0xf]
    %v86 = vld [vmem:[#allocation5 + $0x10] sm:$0xf]
    %v87 = vld [vmem:[#allocation5 + $0x14] sm:$0xf]
    %v88 = vld [vmem:[#allocation5 + $0x18] sm:$0xf]
    %v89 = vld [vmem:[#allocation5 + $0x1c] sm:$0xf]
    %v90 = vld [vmem:[%s2] sm:$0x1]
    %v92 = vlaneseq
    %v93 = vshrl.u32 %v92, 7
    %v94 = vsub.s32 0, %v93
    %v95 = vrot.slane %v90, %v94
    %v105 = vunpack.c.l.b16 %v82
    %v106 = vunpack.c.l.b16 %v83
    %v107 = vunpack.c.l.b16 %v84
    %v108 = vunpack.c.l.b16 %v85
    %v109 = vunpack.c.l.b16 %v86
    %v110 = vunpack.c.l.b16 %v87
    %v111 = vunpack.c.l.b16 %v88
    %v112 = vunpack.c.l.b16 %v89
    %v113 = vpack.c.b16 %v106, %v105
    %v114 = vpack.c.b16 %v108, %v107
    %v115 = vpack.c.b16 %v110, %v109
    %v116 = vpack.c.b16 %v112, %v111
    %vm121 = vcmask 523264
    %v123 = vsel %vm121, %v81, 0
    %125 = vmatprep.subr.bf16.mxu0 0
    %126 = vmatpush1.bf16.msra.mxu0 %v113
    %127 = vmatprep.subr.bf16.mxu0 0
    %128 = vmatpush1.bf16.msra.mxu0 %v114
    %129 = vmatprep.subr.bf16.mxu0 0
    %130 = vmatpush1.bf16.msra.mxu0 %v115
    %131 = vmatprep.subr.bf16.mxu0 0
    %132 = vmatpush1.bf16.msra.mxu0 %v116
    %133 = vmatprep.subr.bf16.mxu0 0
    %134 = vmatpush1.bf16.msra.mxu0 0
    %135 = vmatprep.subr.bf16.mxu0 0
    %136 = vmatpush1.bf16.msra.mxu0 0
    %137 = vmatprep.subr.bf16.mxu0 0
    %138 = vmatpush1.bf16.msra.mxu0 0
    %139 = vmatprep.subr.bf16.mxu0 0
    %140 = vmatpush1.bf16.msra.mxu0 0
    %141 = vmatprep.subr.bf16.mxu0 0
    %142 = vmatpush1.bf16.msra.mxu0 0
    %143 = vmatprep.subr.bf16.mxu0 0
    %144 = vmatpush1.bf16.msra.mxu0 0
    %145 = vmatprep.subr.bf16.mxu0 0
    %146 = vmatpush1.bf16.msra.mxu0 0
    %147 = vmatprep.subr.bf16.mxu0 0
    %148 = vmatpush1.bf16.msra.mxu0 0
    %149 = vmatprep.subr.bf16.mxu0 0
    %150 = vmatpush1.bf16.msra.mxu0 0
    %151 = vmatprep.subr.bf16.mxu0 0
    %152 = vmatpush1.bf16.msra.mxu0 0
    %153 = vmatprep.subr.bf16.mxu0 0
    %154 = vmatpush1.bf16.msra.mxu0 0
    %155 = vmatprep.subr.bf16.mxu0 0
    %156 = vmatpush1.bf16.msra.mxu0 0
    %157 = vmatprep.mubr.bf16.mxu0 0
    %158 = vmatmul.mubr.bf16.gmra.mrb[0].mxu0 %v123
    %v159 = vpop.f32.mrb[0].mxu0
    %v160 = vadd.f32 %v95, %v159
    %v161 = vpop.f32.mrb[0].mxu0
    %v162 = vpop.f32.mrb[0].mxu0
    %v163 = vpop.f32.mrb[0].mxu0
    %164 = vdwg.mxu0
    %v165 = vmax.f32 %v160, 0.0
    %v166 = vpack.c.bf16 %v165, %v165
    %v167 = vld [vmem:[#allocation7] sm:$0xff]
    %v168 = vld [vmem:[#allocation7 + $0x8] sm:$0xff]
    %v169 = vld [vmem:[#allocation7 + $0x10] sm:$0xff]
    %v170 = vld [vmem:[#allocation7 + $0x18] sm:$0xff]
    %v171 = vld [vmem:[#allocation7 + $0x20] sm:$0xff]
    %v172 = vld [vmem:[#allocation7 + $0x28] sm:$0xff]
    %v173 = vld [vmem:[#allocation7 + $0x30] sm:$0xff]
    %v174 = vld [vmem:[#allocation7 + $0x38] sm:$0xff]
    %v175 = vld [vmem:[%s4] sm:$0x3]
    %v177 = vlaneseq
    %v178 = vshrl.u32 %v177, 7
    %v179 = vsub.s32 0, %v178
    %v180 = vrot.slane %v175, %v179
    %v181 = vlaneseq
    %v182 = vshrl.u32 %v181, 7
    %v183 = vsub.s32 1, %v182
    %v184 = vrot.slane %v175, %v183
    %v195 = vunpack.c.l.b16 %v167
    %v196 = vunpack.c.h.b16 %v167
    %v197 = vunpack.c.l.b16 %v168
    %v198 = vunpack.c.h.b16 %v168
    %v199 = vunpack.c.l.b16 %v169
    %v200 = vunpack.c.h.b16 %v169
    %v201 = vunpack.c.l.b16 %v170
    %v202 = vunpack.c.h.b16 %v170
    %v203 = vunpack.c.l.b16 %v171
    %v204 = vunpack.c.h.b16 %v171
    %v205 = vunpack.c.l.b16 %v172
    %v206 = vunpack.c.h.b16 %v172
    %v207 = vunpack.c.l.b16 %v173
    %v208 = vunpack.c.h.b16 %v173
    %v209 = vunpack.c.l.b16 %v174
    %v210 = vunpack.c.h.b16 %v174
    %v211 = vpack.c.b16 %v197, %v195
    %v212 = vpack.c.b16 %v198, %v196
    %v213 = vpack.c.b16 %v201, %v199
    %v214 = vpack.c.b16 %v202, %v200
    %v215 = vpack.c.b16 %v205, %v203
    %v216 = vpack.c.b16 %v206, %v204
    %v217 = vpack.c.b16 %v209, %v207
    %v218 = vpack.c.b16 %v210, %v208
    %v228 = vsel %vm121, %v166, 0
    %230 = vmatprep.subr.bf16.mxu0 %v212
    %231 = vmatpush1.bf16.msra.mxu0 %v211
    %232 = vmatprep.subr.bf16.mxu0 %v214
    %233 = vmatpush1.bf16.msra.mxu0 %v213
    %234 = vmatprep.subr.bf16.mxu0 %v216
    %235 = vmatpush1.bf16.msra.mxu0 %v215
    %236 = vmatprep.subr.bf16.mxu0 %v218
    %237 = vmatpush1.bf16.msra.mxu0 %v217
    %238 = vmatprep.subr.bf16.mxu0 0
    %239 = vmatpush1.bf16.msra.mxu0 0
    %240 = vmatprep.subr.bf16.mxu0 0
    %241 = vmatpush1.bf16.msra.mxu0 0
    %242 = vmatprep.subr.bf16.mxu0 0
    %243 = vmatpush1.bf16.msra.mxu0 0
    %244 = vmatprep.subr.bf16.mxu0 0
    %245 = vmatpush1.bf16.msra.mxu0 0
    %246 = vmatprep.subr.bf16.mxu0 0
    %247 = vmatpush1.bf16.msra.mxu0 0
    %248 = vmatprep.subr.bf16.mxu0 0
    %249 = vmatpush1.bf16.msra.mxu0 0
    %250 = vmatprep.subr.bf16.mxu0 0
    %251 = vmatpush1.bf16.msra.mxu0 0
    %252 = vmatprep.subr.bf16.mxu0 0
    %253 = vmatpush1.bf16.msra.mxu0 0
    %254 = vmatprep.subr.bf16.mxu0 0
    %255 = vmatpush1.bf16.msra.mxu0 0
    %256 = vmatprep.subr.bf16.mxu0 0
    %257 = vmatpush1.bf16.msra.mxu0 0
    %258 = vmatprep.subr.bf16.mxu0 0
    %259 = vmatpush1.bf16.msra.mxu0 0
    %260 = vmatprep.subr.bf16.mxu0 0
    %261 = vmatpush1.bf16.msra.mxu0 0
    %262 = vmatprep.mubr.bf16.mxu0 0
    %263 = vmatmul.mubr.bf16.gmra.mrb[0].mxu0 %v228
    %v264 = vpop.f32.mrb[0].mxu0
    %v265 = vadd.f32 %v180, %v264
    %v266 = vpop.f32.mrb[0].mxu0
    %v267 = vadd.f32 %v184, %v266
    %v268 = vpop.f32.mrb[0].mxu0
    %v269 = vpop.f32.mrb[0].mxu0
    %270 = vdwg.mxu0
    %v271 = vmax.f32 %v265, 0.0
    %v272 = vmax.f32 %v267, 0.0
    %v273 = vpack.c.bf16 %v271, %v271
    %v274 = vpack.c.bf16 %v272, %v272
    %v275 = vld [vmem:[#allocation8] sm:$0xf]
    %v276 = vld [vmem:[#allocation8 + $0x4] sm:$0xf]
    %v277 = vld [vmem:[#allocation8 + $0x8] sm:$0xf]
    %v278 = vld [vmem:[#allocation8 + $0xc] sm:$0xf]
    %v279 = vld [vmem:[#allocation8 + $0x10] sm:$0xf]
    %v280 = vld [vmem:[#allocation8 + $0x14] sm:$0xf]
    %v281 = vld [vmem:[#allocation8 + $0x18] sm:$0xf]
    %v282 = vld [vmem:[#allocation8 + $0x1c] sm:$0xf]
    %v283 = vld [vmem:[#allocation8 + $0x20] sm:$0xf]
    %v284 = vld [vmem:[#allocation8 + $0x24] sm:$0xf]
    %v285 = vld [vmem:[#allocation8 + $0x28] sm:$0xf]
    %v286 = vld [vmem:[#allocation8 + $0x2c] sm:$0xf]
    %v287 = vld [vmem:[#allocation8 + $0x30] sm:$0xf]
    %v288 = vld [vmem:[#allocation8 + $0x34] sm:$0xf]
    %v289 = vld [vmem:[#allocation8 + $0x38] sm:$0xf]
    %v290 = vld [vmem:[#allocation8 + $0x3c] sm:$0xf]
    %v291 = vld [vmem:[#allocation8 + $0x40] sm:$0xf]
    %v292 = vld [vmem:[#allocation8 + $0x44] sm:$0xf]
    %v293 = vld [vmem:[#allocation8 + $0x48] sm:$0xf]
    %v294 = vld [vmem:[#allocation8 + $0x4c] sm:$0xf]
    %v295 = vld [vmem:[#allocation8 + $0x50] sm:$0xf]
    %v296 = vld [vmem:[#allocation8 + $0x54] sm:$0xf]
    %v297 = vld [vmem:[#allocation8 + $0x58] sm:$0xf]
    %v298 = vld [vmem:[#allocation8 + $0x5c] sm:$0xf]
    %v299 = vld [vmem:[#allocation8 + $0x60] sm:$0xf]
    %v300 = vld [vmem:[#allocation8 + $0x64] sm:$0xf]
    %v301 = vld [vmem:[#allocation8 + $0x68] sm:$0xf]
    %v302 = vld [vmem:[#allocation8 + $0x6c] sm:$0xf]
    %v303 = vld [vmem:[#allocation8 + $0x70] sm:$0xf]
    %v304 = vld [vmem:[#allocation8 + $0x74] sm:$0xf]
    %v305 = vld [vmem:[#allocation8 + $0x78] sm:$0xf]
    %v306 = vld [vmem:[#allocation8 + $0x7c] sm:$0xf]
    %v307 = vld [vmem:[%s6] sm:$0x1]
    %v309 = vlaneseq
    %v310 = vshrl.u32 %v309, 7
    %v311 = vsub.s32 0, %v310
    %v312 = vrot.slane %v307, %v311
    %v346 = vunpack.c.l.b16 %v275
    %v347 = vunpack.c.l.b16 %v276
    %v348 = vunpack.c.l.b16 %v277
    %v349 = vunpack.c.l.b16 %v278
    %v350 = vunpack.c.l.b16 %v279
    %v351 = vunpack.c.l.b16 %v280
    %v352 = vunpack.c.l.b16 %v281
    %v353 = vunpack.c.l.b16 %v282
    %v354 = vunpack.c.l.b16 %v283
    %v355 = vunpack.c.l.b16 %v284
    %v356 = vunpack.c.l.b16 %v285
    %v357 = vunpack.c.l.b16 %v286
    %v358 = vunpack.c.l.b16 %v287
    %v359 = vunpack.c.l.b16 %v288
    %v360 = vunpack.c.l.b16 %v289
    %v361 = vunpack.c.l.b16 %v290
    %v362 = vunpack.c.l.b16 %v291
    %v363 = vunpack.c.l.b16 %v292
    %v364 = vunpack.c.l.b16 %v293
    %v365 = vunpack.c.l.b16 %v294
    %v366 = vunpack.c.l.b16 %v295
    %v367 = vunpack.c.l.b16 %v296
    %v368 = vunpack.c.l.b16 %v297
    %v369 = vunpack.c.l.b16 %v298
    %v370 = vunpack.c.l.b16 %v299
    %v371 = vunpack.c.l.b16 %v300
    %v372 = vunpack.c.l.b16 %v301
    %v373 = vunpack.c.l.b16 %v302
    %v374 = vunpack.c.l.b16 %v303
    %v375 = vunpack.c.l.b16 %v304
    %v376 = vunpack.c.l.b16 %v305
    %v377 = vunpack.c.l.b16 %v306
    %v378 = vpack.c.b16 %v347, %v346
    %v379 = vpack.c.b16 %v349, %v348
    %v380 = vpack.c.b16 %v351, %v350
    %v381 = vpack.c.b16 %v353, %v352
    %v382 = vpack.c.b16 %v355, %v354
    %v383 = vpack.c.b16 %v357, %v356
    %v384 = vpack.c.b16 %v359, %v358
    %v385 = vpack.c.b16 %v361, %v360
    %v386 = vpack.c.b16 %v363, %v362
    %v387 = vpack.c.b16 %v365, %v364
    %v388 = vpack.c.b16 %v367, %v366
    %v389 = vpack.c.b16 %v369, %v368
    %v390 = vpack.c.b16 %v371, %v370
    %v391 = vpack.c.b16 %v373, %v372
    %v392 = vpack.c.b16 %v375, %v374
    %v393 = vpack.c.b16 %v377, %v376
    %410 = vmatprep.subr.bf16.mxu0 0
    %411 = vmatpush1.bf16.msra.mxu0 %v378
    %412 = vmatprep.subr.bf16.mxu0 0
    %413 = vmatpush1.bf16.msra.mxu0 %v379
    %414 = vmatprep.subr.bf16.mxu0 0
    %415 = vmatpush1.bf16.msra.mxu0 %v380
    %416 = vmatprep.subr.bf16.mxu0 0
    %417 = vmatpush1.bf16.msra.mxu0 %v381
    %418 = vmatprep.subr.bf16.mxu0 0
    %419 = vmatpush1.bf16.msra.mxu0 %v382
    %420 = vmatprep.subr.bf16.mxu0 0
    %421 = vmatpush1.bf16.msra.mxu0 %v383
    %422 = vmatprep.subr.bf16.mxu0 0
    %423 = vmatpush1.bf16.msra.mxu0 %v384
    %424 = vmatprep.subr.bf16.mxu0 0
    %425 = vmatpush1.bf16.msra.mxu0 %v385
    %426 = vmatprep.subr.bf16.mxu0 0
    %427 = vmatpush1.bf16.msra.mxu0 %v386
    %428 = vmatprep.subr.bf16.mxu0 0
    %429 = vmatpush1.bf16.msra.mxu0 %v387
    %430 = vmatprep.subr.bf16.mxu0 0
    %431 = vmatpush1.bf16.msra.mxu0 %v388
    %432 = vmatprep.subr.bf16.mxu0 0
    %433 = vmatpush1.bf16.msra.mxu0 %v389
    %434 = vmatprep.subr.bf16.mxu0 0
    %435 = vmatpush1.bf16.msra.mxu0 %v390
    %436 = vmatprep.subr.bf16.mxu0 0
    %437 = vmatpush1.bf16.msra.mxu0 %v391
    %438 = vmatprep.subr.bf16.mxu0 0
    %439 = vmatpush1.bf16.msra.mxu0 %v392
    %440 = vmatprep.subr.bf16.mxu0 0
    %441 = vmatpush1.bf16.msra.mxu0 %v393
    %442 = vmatprep.mubr.bf16.mxu0 %v274
    %443 = vmatmul.mubr.bf16.gmra.mrb[0].mxu0 %v273
    %v444 = vpop.f32.mrb[0].mxu0
    %v445 = vadd.f32 %v312, %v444
    %v446 = vpop.f32.mrb[0].mxu0
    %v447 = vpop.f32.mrb[0].mxu0
    %v448 = vpop.f32.mrb[0].mxu0
    %449 = vdwg.mxu0
    %450 = vst [vmem:[#allocation10] sm:$0xff] %v445
    // Predicated region
    $region46: #{tpu_custom_call.1} parent=1 // pred_check
      _
    $region47: #{tpu_custom_call.1} parent=1 // pred_check_branch
      %452 = sbr.rel (0) target = $region49
    $region48: #{tpu_custom_call.1} parent=1 // pred_region
      %s454 = ssub.s32 128, 128
      %455 = vsyncadd [#allocation4], %s454
      %s457 = sshll.u32 [#allocation10], 4
      %s458 = int_to_ptr.vmem [resolvable:$true] %s457
      %460 = dma.vmem_to_hbm [thread:$0]  %s458, 128, %s7, [#allocation4]
    $region49: #{tpu_custom_call.1} parent=1 // pred_fallthru
      _
    // Predicated region
    $region50: #{tpu_custom_call.1} parent=1 // pred_check
      _
    $region51: #{tpu_custom_call.1} parent=1 // pred_check_branch
      %462 = sbr.rel (0) target = $region53
    $region52: #{tpu_custom_call.1} parent=1 // pred_region
      %463 = dma.done [#allocation4], 128
    $region53: #{tpu_custom_call.1} parent=1 // pred_fallthru
      _
    %464 = vsyncpa [#allocation3], 1
    %465 = vsyncpa [#allocation6], 1
    %466 = vsyncpa [#allocation9], 1
    %467 = vsyncpa [#allocation4], 1

</llo_original>
